<compile_context>
chip_gen: v5e
topology: v5e:2x2
jax: 0.10.0
libtpu: 0.0.40
codegen_flags: <defaults>
</compile_context>

<pallas_src>
import functools

import jax
import jax.numpy as jnp
from jax.experimental import pallas as pl
from jax.experimental.pallas import tpu as pltpu

N_OUT = 10  # logits for 10 digits


def _round_up(x, m):
    return ((x + m - 1) // m) * m


def prepare_params(weight, bias):
    """One-time parameter layout transform (hoisted out of the forward path).

    Args:
      weight: (10, D) float32  (PyTorch layout: out_features x in_features)
      bias:   (10,)   float32
    Returns:
      w_t: (D, 10) float32  -- transposed weight
      b:   (1, 10) float32  -- bias as a 2-D row for TPU layout
    """
    return weight.T, bias.reshape(1, -1)


def _linear_kernel(x_ref, w_ref, b_ref, o_ref):
    # x_ref: (TB, D), w_ref: (D, 10), b_ref: (1, 10), o_ref: (TB, 10)
    acc = jnp.dot(x_ref[...], w_ref[...], preferred_element_type=jnp.float32)
    o_ref[...] = (acc + b_ref[...]).astype(o_ref.dtype)


@functools.partial(jax.jit, static_argnames=("tile_b",))
def digit_classifier_forward(x, w_t, b, *, tile_b=4096):
    """Equivalent of PyTorch: nn.Linear(d_input, 10)(x).

    Args:
      x:   (B, D) float32
      w_t: (D, 10) float32  from prepare_params
      b:   (1, 10) float32  from prepare_params
    Returns:
      (B, 10) float32 logits
    """
    B, D = x.shape
    n_out = w_t.shape[1]

    # Batch tile: multiple of 8 (sublane). Cap at round_up(cdiv(B, 2), 8) so
    # the grid has >= 2 steps whenever B > 8 (megacore on v7x); cap at tile_b
    # so per-step VMEM stays small. No batch padding: Pallas masks the
    # partial tail block.
    tb = max(8, min(tile_b, _round_up(pl.cdiv(B, 2), 8)))
    grid = (pl.cdiv(B, tb),)

    # VMEM budget: double-buffered x + out tiles plus the resident weight and
    # bias, with headroom for compiler scratch; capped well below v7x's
    # 64 MiB per-TC physical VMEM.
    vmem_bytes = 4 * (2 * tb * (D + n_out) + D * n_out + n_out)
    vmem_bytes = min(vmem_bytes + (2 << 20), 40 << 20)

    # Honest traffic estimate (no padding anywhere) so XLA schedules/overlaps
    # the surrounding ops correctly.
    cost = pl.CostEstimate(
        flops=2 * B * D * n_out,
        bytes_accessed=4 * (B * D + D * n_out + B * n_out + n_out),
        transcendentals=0,
    )

    return pl.pallas_call(
        _linear_kernel,
        out_shape=jax.ShapeDtypeStruct((B, n_out), x.dtype),
        grid=grid,
        in_specs=[
            pl.BlockSpec((tb, D), lambda i: (i, 0)),       # x: tiled over batch
            pl.BlockSpec((D, n_out), lambda i: (0, 0)),    # W^T: VMEM-resident
            pl.BlockSpec((1, n_out), lambda i: (0, 0)),    # bias: VMEM-resident
        ],
        out_specs=pl.BlockSpec((tb, n_out), lambda i: (i, 0)),
        compiler_params=pltpu.CompilerParams(
            dimension_semantics=("parallel",),             # megacore on v7x
            vmem_limit_bytes=vmem_bytes,
        ),
        cost_estimate=cost,
    )(x, w_t, b)


if __name__ == "__main__":
    key = jax.random.PRNGKey(0)
    B, D = 2, 32  # small shapes consistent with the module (d_input=32)

    kx, kw, kb = jax.random.split(key, 3)
    x = jax.random.normal(kx, (B, D), dtype=jnp.float32)

    # Deterministic parameter init (PyTorch-like uniform(-1/sqrt(D), 1/sqrt(D)))
    bound = 1.0 / jnp.sqrt(jnp.float32(D))
    weight = jax.random.uniform(kw, (N_OUT, D), minval=-bound, maxval=bound,
                                dtype=jnp.float32)
    bias = jax.random.uniform(kb, (N_OUT,), minval=-bound, maxval=bound,
                              dtype=jnp.float32)

    # One-time layout transform (outside the per-call path).
    w_t, b = prepare_params(weight, bias)

    out = digit_classifier_forward(x, w_t, b)
    jax.block_until_ready(out)

    # Reference check against plain JAX
    ref = x @ weight.T + bias
    assert out.shape == (B, N_OUT)
    assert jnp.allclose(out, ref, atol=1e-5, rtol=1e-5)

    print("KERNEL_OK")
</pallas_src>

<mosaic_0001>
module attributes {stable_mosaic.version = 11 : i64} {
  func.func @_linear_kernel(%arg0: i32, %arg1: memref<8x32xf32, #tpu.memory_space<vmem>>, %arg2: memref<32x10xf32, #tpu.memory_space<vmem>>, %arg3: memref<1x10xf32, #tpu.memory_space<vmem>>, %arg4: memref<8x10xf32, #tpu.memory_space<vmem>>) attributes {dimension_semantics = [#tpu.dimension_semantics<parallel>], iteration_bounds = array<i64: 1>, scalar_prefetch = 0 : i64, scratch_operands = 0 : i64, tpu.core_type = #tpu.core_type<tc>, window_params = [{transform_indices = @transform_0, window_bounds = array<i64: 8, 32>}, {pipeline_mode = #tpu.pipeline_mode<synchronous>, transform_indices = @transform_1, window_bounds = array<i64: 32, 10>}, {pipeline_mode = #tpu.pipeline_mode<synchronous>, transform_indices = @transform_2, window_bounds = array<i64: 1, 10>}, {transform_indices = @transform_3, window_bounds = array<i64: 8, 10>}]} {
    %c0 = arith.constant 0 : index
    %c0_0 = arith.constant 0 : index
    %0 = vector.load %arg1[%c0, %c0_0] : memref<8x32xf32, #tpu.memory_space<vmem>>, vector<8x32xf32>
    %c0_1 = arith.constant 0 : index
    %c0_2 = arith.constant 0 : index
    %1 = vector.load %arg2[%c0_1, %c0_2] : memref<32x10xf32, #tpu.memory_space<vmem>>, vector<32x10xf32>
    %cst = arith.constant dense<0.000000e+00> : vector<8x10xf32>
    %2 = tpu.matmul %0, %1, %cst {dimension_numbers = #tpu.dot_dimension_numbers<[1], [0], [0], [1], [0, 0, 1, 1], [], []>} : vector<8x32xf32>, vector<32x10xf32>, vector<8x10xf32> -> vector<8x10xf32>
    %c0_3 = arith.constant 0 : index
    %c0_4 = arith.constant 0 : index
    %3 = vector.load %arg3[%c0_3, %c0_4] : memref<1x10xf32, #tpu.memory_space<vmem>>, vector<1x10xf32>
    %4 = vector.broadcast %3 : vector<1x10xf32> to vector<8x10xf32>
    %5 = arith.addf %2, %4 : vector<8x10xf32>
    %c0_5 = arith.constant 0 : index
    %c0_6 = arith.constant 0 : index
    %6 = vector.load %arg4[%c0_5, %c0_6] : memref<8x10xf32, #tpu.memory_space<vmem>>, vector<8x10xf32>
    tpu.vector_store %arg4[%c0_5, %c0_6], %5 {strides = array<i32>} : memref<8x10xf32, #tpu.memory_space<vmem>>, vector<8x10xf32>,
    return
  }
  func.func @transform_0(%arg0: i32) -> (i32, i32) {
    %c0_i32 = arith.constant 0 : i32
    %c0_i32_0 = arith.constant 0 : i32
    return %arg0, %c0_i32 : i32, i32
  }
  func.func @transform_1(%arg0: i32) -> (i32, i32) {
    %c0_i32 = arith.constant 0 : i32
    %c0_i32_0 = arith.constant 0 : i32
    %c0_i32_1 = arith.constant 0 : i32
    return %c0_i32, %c0_i32_0 : i32, i32
  }
  func.func @transform_2(%arg0: i32) -> (i32, i32) {
    %c0_i32 = arith.constant 0 : i32
    %c0_i32_0 = arith.constant 0 : i32
    %c0_i32_1 = arith.constant 0 : i32
    return %c0_i32, %c0_i32_0 : i32, i32
  }
  func.func @transform_3(%arg0: i32) -> (i32, i32) {
    %c0_i32 = arith.constant 0 : i32
    %c0_i32_0 = arith.constant 0 : i32
    return %arg0, %c0_i32 : i32, i32
  }
}

</mosaic_0001>

<llo_original>
// kernel: digit_classifier_forward.1
$region0: #{digit_classifier_forward.1}
  #allocation0 [shape = 'u32[]', space=smem, size = 0x4, offset = 0x4, fixed_abs, tag = 'smem constant byte address 0x4 - core index']
  #allocation1 [shape = 'u32[72,128]{1,0:T(1,128)}', space=vmem, size = 0x9000, scoped, tag = 'internal scratch']
  %s0 = inlined_call_operand.vmem [shape: f32[2,32], index: 0, kind: input, shape index: {}]
  %s1 = inlined_call_operand.vmem [shape: f32[32,10], index: 1, kind: input, shape index: {}]
  %s2 = inlined_call_operand.vmem [shape: f32[1,10], index: 2, kind: input, shape index: {}]
  %s3 = inlined_call_operand.hbm [shape: f32[2,10], index: 3, kind: output, shape index: {}]
  %s4 = sld [smem:[#allocation0]]
  $region22: #{digit_classifier_forward.1} parent=0
    _
  %s6 = ssub.s32 1, %s4
  %s7 = scalar_select 0, %s6, %s4
  $region1: #{digit_classifier_forward.1} parent=0
    #allocation2 [shape = 'u8[4096]{0}', space=vmem, size = 0x1000, scoped, tag = 'output window, operand 0, single buffered']
    #allocation3 [shape = 's32[1]{0}', space=sflag, size = 0x4, scoped, tag = 'scoped memory for digit_classifier_forward.1']
    %8 = vsyncpa [#allocation3], 0
    // Predicated region
    $region2: #{digit_classifier_forward.1} parent=1 // pred_check
      _
    $region3: #{digit_classifier_forward.1} parent=1 // pred_check_branch
      %10 = sbr.rel (0) target = $region5
    $region4: #{digit_classifier_forward.1} parent=1 // pred_region
      _
    $region5: #{digit_classifier_forward.1} parent=1 // pred_fallthru
      _
    // Predicated region
    $region6: #{digit_classifier_forward.1} parent=1 // pred_check
      _
    $region7: #{digit_classifier_forward.1} parent=1 // pred_check_branch
      %12 = sbr.rel (0) target = $region9
    $region8: #{digit_classifier_forward.1} parent=1 // pred_region
      _
    $region9: #{digit_classifier_forward.1} parent=1 // pred_fallthru
      _
    // Predicated region
    $region10: #{digit_classifier_forward.1} parent=1 // pred_check
      _
    $region11: #{digit_classifier_forward.1} parent=1 // pred_check_branch
      %14 = sbr.rel (0) target = $region13
    $region12: #{digit_classifier_forward.1} parent=1 // pred_region
      _
    $region13: #{digit_classifier_forward.1} parent=1 // pred_fallthru
      _
    %v15 = vld [vmem:[%s0] sm:$0xff]
    %v16 = vld [vmem:[%s1] sm:$0xff]
    %v17 = vld [vmem:[%s1 + $0x8] sm:$0xff]
    %v18 = vld [vmem:[%s1 + $0x10] sm:$0xff]
    %v19 = vld [vmem:[%s1 + $0x18] sm:$0xff]
    %v20 = vld [vmem:[%s2] sm:$0x1]
    %v22 = vperm.slane %v20, 0
    %vm24 = vcmask 261120
    %v26 = vsel %vm24, %v15, 0
    %28 = vmatpush.msra.mxu0 0.0
    %29 = vmatpush.msra.mxu0 0.0
    %30 = vmatpush.msra.mxu0 0.0
    %31 = vmatpush.msra.mxu0 0.0
    %32 = vmatpush.msra.mxu0 0.0
    %33 = vmatpush.msra.mxu0 0.0
    %34 = vmatpush.msra.mxu0 0.0
    %35 = vmatpush.msra.mxu0 0.0
    %36 = vmatpush.msra.mxu0 0.0
    %37 = vmatpush.msra.mxu0 0.0
    %38 = vmatpush.msra.mxu0 0.0
    %39 = vmatpush.msra.mxu0 0.0
    %40 = vmatpush.msra.mxu0 %v19
    %41 = vmatpush.msra.mxu0 %v18
    %42 = vmatpush.msra.mxu0 %v17
    %43 = vmatpush.msra.mxu0 %v16
    %44 = vmatmul.f32.gmra.mxu0 %v26
    %v45 = vpop.f32.mrf.mxu0
    %v46 = vadd.f32 %v22, %v45
    %47 = vdwg.mxu0
    %vm48 = vcmask 80896
    %49 = vst.msk [vmem:[#allocation2] sm:$0xff] %vm48, %v46
    // Predicated region
    $region14: #{digit_classifier_forward.1} parent=1 // pred_check
      _
    $region15: #{digit_classifier_forward.1} parent=1 // pred_check_branch
      %51 = sbr.rel (0) target = $region17
    $region16: #{digit_classifier_forward.1} parent=1 // pred_region
      %53 = vsyncadd [#allocation3], 96
      %s54 = sshll.u32 [#allocation2], 4
      %s55 = int_to_ptr.vmem [resolvable:$true] %s54
      %s56 = sshll.u32 %s3, 4
      %s57 = int_to_ptr.hbm [resolvable:$true] %s56
      %62 = dma.vmem_to_hbm [thread:$0]  %s55, 32, %s57, [#allocation3], 32, 32, 2
    $region17: #{digit_classifier_forward.1} parent=1 // pred_fallthru
      _
    // Predicated region
    $region18: #{digit_classifier_forward.1} parent=1 // pred_check
      _
    $region19: #{digit_classifier_forward.1} parent=1 // pred_check_branch
      %64 = sbr.rel (0) target = $region21
    $region20: #{digit_classifier_forward.1} parent=1 // pred_region
      %66 = dma.done [#allocation3], 128
    $region21: #{digit_classifier_forward.1} parent=1 // pred_fallthru
      _
    %67 = vsyncpa [#allocation3], 1

</llo_original>
